<compile_context>
chip_gen: v7x
topology: tpu7x:2x2x1
jax: 0.10.0
libtpu: 0.0.40
codegen_flags: <defaults>
</compile_context>

<pallas_src>
import jax
import jax.numpy as jnp
from jax import lax
from jax.experimental import pallas as pl
from jax.experimental.pallas import tpu as pltpu


def _round_up(x, m):
    return ((x + m - 1) // m) * m


def _kernel_single_k(x_ref, w_ref, o_ref):
    # x_ref: (Bp, Kp)  resident activations (bf16)
    # w_ref: (tn, Kp)  native (num_classes, feature_dim) weight slab (bf16)
    # o_ref: (Bp, tn)  output logits (f32)
    o_ref[...] = lax.dot_general(
        x_ref[...],
        w_ref[...],
        dimension_numbers=(((1,), (1,)), ((), ())),  # contract feature dims
        preferred_element_type=jnp.float32,
    ).astype(o_ref.dtype)


def _kernel_split_k(x_ref, w_ref, o_ref, acc_ref):
    # grid = (n_tiles, k_tiles); K is the reduction axis (last, "arbitrary").
    @pl.when(pl.program_id(1) == 0)
    def _():
        acc_ref[...] = jnp.zeros_like(acc_ref)

    acc_ref[...] += lax.dot_general(
        x_ref[...],
        w_ref[...],
        dimension_numbers=(((1,), (1,)), ((), ())),
        preferred_element_type=jnp.float32,
    )

    @pl.when(pl.program_id(1) == pl.num_programs(1) - 1)
    def _():
        o_ref[...] = acc_ref[...].astype(o_ref.dtype)


def classifier_forward(x, weight, *, compute_dtype=jnp.bfloat16,
                       tn=None, max_tk=4096):
    """y = x @ weight.T  (nn.Linear, bias=False).

    x:      (B, feature_dim)
    weight: (num_classes, feature_dim)   -- native PyTorch Linear layout
    returns (B, num_classes) in x.dtype
    """
    B, K = x.shape
    N, K2 = weight.shape
    assert K == K2, "feature_dim mismatch"
    out_dtype = x.dtype

    # ---- pad to TPU-friendly shapes (zero-padding preserves the matmul) ----
    Bp = _round_up(B, 8)            # sublane alignment for output rows
    Kp = _round_up(K, 128)          # lane alignment of the contraction dim
    Np128 = _round_up(N, 128)       # lane alignment of the class dim

    # class-dim tile: lane-dense, 128-aligned; 512 amortizes per-step overhead
    tn_ = tn if tn is not None else min(512, Np128)
    tn_ = max(128, _round_up(tn_, 128))
    Np = _round_up(Np128, tn_)

    # feature-dim tile: collapse the K grid axis whenever it fits comfortably
    if Kp <= max_tk:
        tk = Kp
    else:
        tk = max_tk
        Kp = _round_up(Kp, tk)

    xp = jnp.pad(x, ((0, Bp - B), (0, Kp - K))).astype(compute_dtype)
    wp = jnp.pad(weight, ((0, Np - N), (0, Kp - K))).astype(compute_dtype)

    n_tiles = Np // tn_
    k_tiles = Kp // tk

    if k_tiles == 1:
        # Single K step: no accumulator scratch, no pl.when, minimal dispatch.
        out = pl.pallas_call(
            _kernel_single_k,
            out_shape=jax.ShapeDtypeStruct((Bp, Np), out_dtype),
            grid_spec=pltpu.PrefetchScalarGridSpec(
                num_scalar_prefetch=0,
                grid=(n_tiles,),
                in_specs=[
                    pl.BlockSpec((Bp, Kp), lambda j: (0, 0)),    # x resident
                    pl.BlockSpec((tn_, Kp), lambda j: (j, 0)),   # weight slab
                ],
                out_specs=pl.BlockSpec((Bp, tn_), lambda j: (0, j)),
            ),
            compiler_params=pltpu.CompilerParams(
                dimension_semantics=("parallel",),
            ),
        )(xp, wp)
    else:
        # Very large feature_dim: split K with an f32 VMEM accumulator.
        out = pl.pallas_call(
            _kernel_split_k,
            out_shape=jax.ShapeDtypeStruct((Bp, Np), out_dtype),
            grid_spec=pltpu.PrefetchScalarGridSpec(
                num_scalar_prefetch=0,
                grid=(n_tiles, k_tiles),
                in_specs=[
                    pl.BlockSpec((Bp, tk), lambda j, k: (0, k)),
                    pl.BlockSpec((tn_, tk), lambda j, k: (j, k)),
                ],
                out_specs=pl.BlockSpec((Bp, tn_), lambda j, k: (0, j)),
                scratch_shapes=[pltpu.VMEM((Bp, tn_), jnp.float32)],
            ),
            compiler_params=pltpu.CompilerParams(
                dimension_semantics=("parallel", "arbitrary"),
            ),
        )(xp, wp)

    return out[:B, :N]


def _check(batch, feature_dim, num_classes, key, **kwargs):
    kx, kw = jax.random.split(key)
    x = jax.random.normal(kx, (batch, feature_dim), dtype=jnp.float32)
    # weights_init_classifier: Linear weight ~ Normal(std=0.001), no bias.
    weight = 0.001 * jax.random.normal(
        kw, (num_classes, feature_dim), dtype=jnp.float32
    )

    y = classifier_forward(x, weight, **kwargs)
    y = jax.block_until_ready(y)

    y_ref = x @ weight.T  # f32 reference (same semantics as PyTorch)
    assert y.shape == (batch, num_classes)
    # bf16 inputs + f32 accumulation -> relative error well under 1%.
    assert jnp.allclose(y, y_ref, rtol=5e-2, atol=1e-4), (
        f"mismatch for shape ({batch},{feature_dim},{num_classes})"
    )


if __name__ == "__main__":
    key = jax.random.PRNGKey(0)
    k0, k1, k2 = jax.random.split(key, 3)

    # Aligned small shapes (single-step fast path): grid=(1,), no accumulator.
    _check(8, 256, 128, k0)
    # Unaligned batch / classes / features -> exercises wrapper padding+slice.
    _check(5, 384, 200, k1)
    # Force the split-K accumulator path (tiny max_tk just for coverage).
    _check(8, 384, 128, k2, max_tk=128)

    print("KERNEL_OK")
</pallas_src>

<mosaic_0001>
module attributes {stable_mosaic.version = 11 : i64} {
  func.func @_kernel_single_k(%arg0: i32, %arg1: memref<8x256xbf16, #tpu.memory_space<vmem>>, %arg2: memref<128x256xbf16, #tpu.memory_space<vmem>>, %arg3: memref<8x128xf32, #tpu.memory_space<vmem>>) attributes {dimension_semantics = [#tpu.dimension_semantics<parallel>], iteration_bounds = array<i64: 1>, scalar_prefetch = 0 : i64, scratch_operands = 0 : i64, tpu.core_type = #tpu.core_type<tc>, window_params = [{pipeline_mode = #tpu.pipeline_mode<synchronous>, transform_indices = @transform_0, window_bounds = array<i64: 8, 256>}, {transform_indices = @transform_1, window_bounds = array<i64: 128, 256>}, {transform_indices = @transform_2, window_bounds = array<i64: 8, 128>}]} {
    %c0 = arith.constant 0 : index
    %c0_0 = arith.constant 0 : index
    %0 = vector.load %arg1[%c0, %c0_0] : memref<8x256xbf16, #tpu.memory_space<vmem>>, vector<8x256xbf16>
    %c0_1 = arith.constant 0 : index
    %c0_2 = arith.constant 0 : index
    %1 = vector.load %arg2[%c0_1, %c0_2] : memref<128x256xbf16, #tpu.memory_space<vmem>>, vector<128x256xbf16>
    %cst = arith.constant dense<0.000000e+00> : vector<8x128xf32>
    %2 = tpu.matmul %0, %1, %cst {dimension_numbers = #tpu.dot_dimension_numbers<[1], [1], [0], [0], [0, 0, 1, 0], [], []>} : vector<8x256xbf16>, vector<128x256xbf16>, vector<8x128xf32> -> vector<8x128xf32>
    %c0_3 = arith.constant 0 : index
    %c0_4 = arith.constant 0 : index
    %3 = vector.load %arg3[%c0_3, %c0_4] : memref<8x128xf32, #tpu.memory_space<vmem>>, vector<8x128xf32>
    tpu.vector_store %arg3[%c0_3, %c0_4], %2 {strides = array<i32>} : memref<8x128xf32, #tpu.memory_space<vmem>>, vector<8x128xf32>,
    return
  }
  func.func @transform_0(%arg0: i32) -> (i32, i32) {
    %c0_i32 = arith.constant 0 : i32
    %c0_i32_0 = arith.constant 0 : i32
    %c0_i32_1 = arith.constant 0 : i32
    return %c0_i32, %c0_i32_0 : i32, i32
  }
  func.func @transform_1(%arg0: i32) -> (i32, i32) {
    %c0_i32 = arith.constant 0 : i32
    %c0_i32_0 = arith.constant 0 : i32
    return %arg0, %c0_i32 : i32, i32
  }
  func.func @transform_2(%arg0: i32) -> (i32, i32) {
    %c0_i32 = arith.constant 0 : i32
    %c0_i32_0 = arith.constant 0 : i32
    return %c0_i32, %arg0 : i32, i32
  }
}

</mosaic_0001>

<llo_original>
// kernel: tpu_custom_call.1
$region0: #{tpu_custom_call.1}
  #allocation0 [shape = 'u32[]', space=smem, size = 0x4, offset = 0x4, fixed_abs, tag = 'smem constant byte address 0x4 - core index']
  #allocation1 [shape = 'u32[144,128]{1,0:T(1,128)}', space=vmem, size = 0x12000, scoped, tag = 'internal scratch']
  %s0 = inlined_call_operand.hbm [shape: bf16[8,256], index: 0, kind: input, shape index: {}]
  %s1 = inlined_call_operand.hbm [shape: bf16[128,256], index: 1, kind: input, shape index: {}]
  %s2 = inlined_call_operand.hbm [shape: f32[8,128], index: 2, kind: output, shape index: {}]
  %s3 = sld [smem:[#allocation0]]
  $region26: #{tpu_custom_call.1} parent=0
    _
  %s5 = ssub.s32 1, %s3
  %s6 = scalar_select 0, %s5, %s3
  $region1: #{tpu_custom_call.1} parent=0
    #allocation2 [shape = 'u8[4096]{0}', space=vmem, size = 0x1000, scoped, tag = 'input window, operand 0, single buffered']
    #allocation3 [shape = 's32[1]{0}', space=sflag, size = 0x4, scoped, tag = 'scoped memory for tpu_custom_call.1']
    #allocation4 [shape = 's32[1]{0}', space=sflag, size = 0x4, scoped, tag = 'scoped memory for tpu_custom_call.1']
    #allocation5 [shape = 'u8[65536]{0}', space=vmem, size = 0x10000, scoped, tag = 'input window, operand 1, single buffered']
    #allocation6 [shape = 's32[1]{0}', space=sflag, size = 0x4, scoped, tag = 'scoped memory for tpu_custom_call.1']
    #allocation7 [shape = 'u8[4096]{0}', space=vmem, size = 0x1000, scoped, tag = 'output window, operand 0, single buffered']
    %7 = vsyncpa [#allocation3], 0
    %8 = vsyncpa [#allocation6], 0
    %9 = vsyncpa [#allocation4], 0
    // Predicated region
    $region2: #{tpu_custom_call.1} parent=1 // pred_check
      _
    $region3: #{tpu_custom_call.1} parent=1 // pred_check_branch
      %11 = sbr.rel (0) target = $region5
    $region4: #{tpu_custom_call.1} parent=1 // pred_region
      %s13 = ssub.s32 128, 128
      %14 = vsyncadd [#allocation3], %s13
      %s16 = sshll.u32 [#allocation2], 4
      %s17 = int_to_ptr.vmem [resolvable:$true] %s16
      %19 = dma.hbm_to_vmem [thread:$0]  %s0, 128, %s17, [#allocation3]
    $region5: #{tpu_custom_call.1} parent=1 // pred_fallthru
      _
    // Predicated region
    $region6: #{tpu_custom_call.1} parent=1 // pred_check
      _
    $region7: #{tpu_custom_call.1} parent=1 // pred_check_branch
      %21 = sbr.rel (0) target = $region9
    $region8: #{tpu_custom_call.1} parent=1 // pred_region
      %s23 = ssub.s32 2048, 2048
      %24 = vsyncadd [#allocation6], %s23
      %s25 = sshll.u32 [#allocation5], 4
      %s26 = int_to_ptr.vmem [resolvable:$true] %s25
      %31 = dma.hbm_to_vmem [thread:$0]  %s1, 2048, %s26, [#allocation6], 128, 128, 8
    $region9: #{tpu_custom_call.1} parent=1 // pred_fallthru
      _
    // Predicated region
    $region10: #{tpu_custom_call.1} parent=1 // pred_check
      _
    $region11: #{tpu_custom_call.1} parent=1 // pred_check_branch
      %33 = sbr.rel (0) target = $region13
    $region12: #{tpu_custom_call.1} parent=1 // pred_region
      %34 = dma.done [#allocation3], 128
    $region13: #{tpu_custom_call.1} parent=1 // pred_fallthru
      _
    // Predicated region
    $region14: #{tpu_custom_call.1} parent=1 // pred_check
      _
    $region15: #{tpu_custom_call.1} parent=1 // pred_check_branch
      %36 = sbr.rel (0) target = $region17
    $region16: #{tpu_custom_call.1} parent=1 // pred_region
      %37 = dma.done [#allocation6], 2048
    $region17: #{tpu_custom_call.1} parent=1 // pred_fallthru
      _
    %v39 = vld [vmem:[#allocation2] sm:$0xff]
    %v40 = vld [vmem:[#allocation5] sm:$0xff]
    %v41 = vld [vmem:[#allocation5 + $0x8] sm:$0xff]
    %v42 = vld [vmem:[#allocation5 + $0x10] sm:$0xff]
    %v43 = vld [vmem:[#allocation5 + $0x18] sm:$0xff]
    %v44 = vld [vmem:[#allocation5 + $0x20] sm:$0xff]
    %v45 = vld [vmem:[#allocation5 + $0x28] sm:$0xff]
    %v46 = vld [vmem:[#allocation5 + $0x30] sm:$0xff]
    %v47 = vld [vmem:[#allocation5 + $0x38] sm:$0xff]
    %v48 = vld [vmem:[#allocation5 + $0x40] sm:$0xff]
    %v49 = vld [vmem:[#allocation5 + $0x48] sm:$0xff]
    %v50 = vld [vmem:[#allocation5 + $0x50] sm:$0xff]
    %v51 = vld [vmem:[#allocation5 + $0x58] sm:$0xff]
    %v52 = vld [vmem:[#allocation5 + $0x60] sm:$0xff]
    %v53 = vld [vmem:[#allocation5 + $0x68] sm:$0xff]
    %v54 = vld [vmem:[#allocation5 + $0x70] sm:$0xff]
    %v55 = vld [vmem:[#allocation5 + $0x78] sm:$0xff]
    %v57 = vunpack.c.l.b16 %v39
    %v58 = vunpack.c.h.b16 %v39
    %v59 = vpack.c.b16 %v57, %v57
    %v60 = vpack.c.b16 %v58, %v58
    %v79 = vunpack.c.l.b16 %v40
    %v80 = vunpack.c.h.b16 %v40
    %v81 = vunpack.c.l.b16 %v41
    %v82 = vunpack.c.h.b16 %v41
    %v83 = vunpack.c.l.b16 %v42
    %v84 = vunpack.c.h.b16 %v42
    %v85 = vunpack.c.l.b16 %v43
    %v86 = vunpack.c.h.b16 %v43
    %v87 = vunpack.c.l.b16 %v44
    %v88 = vunpack.c.h.b16 %v44
    %v89 = vunpack.c.l.b16 %v45
    %v90 = vunpack.c.h.b16 %v45
    %v91 = vunpack.c.l.b16 %v46
    %v92 = vunpack.c.h.b16 %v46
    %v93 = vunpack.c.l.b16 %v47
    %v94 = vunpack.c.h.b16 %v47
    %v95 = vunpack.c.l.b16 %v48
    %v96 = vunpack.c.h.b16 %v48
    %v97 = vunpack.c.l.b16 %v49
    %v98 = vunpack.c.h.b16 %v49
    %v99 = vunpack.c.l.b16 %v50
    %v100 = vunpack.c.h.b16 %v50
    %v101 = vunpack.c.l.b16 %v51
    %v102 = vunpack.c.h.b16 %v51
    %v103 = vunpack.c.l.b16 %v52
    %v104 = vunpack.c.h.b16 %v52
    %v105 = vunpack.c.l.b16 %v53
    %v106 = vunpack.c.h.b16 %v53
    %v107 = vunpack.c.l.b16 %v54
    %v108 = vunpack.c.h.b16 %v54
    %v109 = vunpack.c.l.b16 %v55
    %v110 = vunpack.c.h.b16 %v55
    %v111 = vpack.c.b16 %v81, %v79
    %v112 = vpack.c.b16 %v82, %v80
    %v113 = vpack.c.b16 %v85, %v83
    %v114 = vpack.c.b16 %v86, %v84
    %v115 = vpack.c.b16 %v89, %v87
    %v116 = vpack.c.b16 %v90, %v88
    %v117 = vpack.c.b16 %v93, %v91
    %v118 = vpack.c.b16 %v94, %v92
    %v119 = vpack.c.b16 %v97, %v95
    %v120 = vpack.c.b16 %v98, %v96
    %v121 = vpack.c.b16 %v101, %v99
    %v122 = vpack.c.b16 %v102, %v100
    %v123 = vpack.c.b16 %v105, %v103
    %v124 = vpack.c.b16 %v106, %v104
    %v125 = vpack.c.b16 %v109, %v107
    %v126 = vpack.c.b16 %v110, %v108
    %143 = vmatprep.subr.bf16.mxu0 %v112
    %144 = vmatpush1.bf16.xpose.msra.mxu0 %v111
    %145 = vmatprep.subr.bf16.mxu0 %v114
    %146 = vmatpush1.bf16.xpose.msra.mxu0 %v113
    %147 = vmatprep.subr.bf16.mxu0 %v116
    %148 = vmatpush1.bf16.xpose.msra.mxu0 %v115
    %149 = vmatprep.subr.bf16.mxu0 %v118
    %150 = vmatpush1.bf16.xpose.msra.mxu0 %v117
    %151 = vmatprep.subr.bf16.mxu0 %v120
    %152 = vmatpush1.bf16.xpose.msra.mxu0 %v119
    %153 = vmatprep.subr.bf16.mxu0 %v122
    %154 = vmatpush1.bf16.xpose.msra.mxu0 %v121
    %155 = vmatprep.subr.bf16.mxu0 %v124
    %156 = vmatpush1.bf16.xpose.msra.mxu0 %v123
    %157 = vmatprep.subr.bf16.mxu0 %v126
    %158 = vmatpush1.bf16.xpose.msra.mxu0 %v125
    %159 = vmatprep.subr.bf16.mxu0 0
    %160 = vmatpush1.bf16.xpose.msra.mxu0 0
    %161 = vmatprep.subr.bf16.mxu0 0
    %162 = vmatpush1.bf16.xpose.msra.mxu0 0
    %163 = vmatprep.subr.bf16.mxu0 0
    %164 = vmatpush1.bf16.xpose.msra.mxu0 0
    %165 = vmatprep.subr.bf16.mxu0 0
    %166 = vmatpush1.bf16.xpose.msra.mxu0 0
    %167 = vmatprep.subr.bf16.mxu0 0
    %168 = vmatpush1.bf16.xpose.msra.mxu0 0
    %169 = vmatprep.subr.bf16.mxu0 0
    %170 = vmatpush1.bf16.xpose.msra.mxu0 0
    %171 = vmatprep.subr.bf16.mxu0 0
    %172 = vmatpush1.bf16.xpose.msra.mxu0 0
    %173 = vmatprep.subr.bf16.mxu0 0
    %174 = vmatpush1.bf16.xpose.msra.mxu0 0
    %175 = vmatprep.mubr.bf16.mxu0 %v60
    %176 = vmatmul.mubr.bf16.gmra.mrb[0].mxu0 %v59
    %v177 = vpop.f32.mrb[0].mxu0
    %v178 = vadd.f32 0.0, %v177
    %v179 = vpop.f32.mrb[0].mxu0
    %v180 = vpop.f32.mrb[0].mxu0
    %v181 = vpop.f32.mrb[0].mxu0
    %182 = vdwg.mxu0
    %183 = vst [vmem:[#allocation7] sm:$0xff] %v178
    // Predicated region
    $region18: #{tpu_custom_call.1} parent=1 // pred_check
      _
    $region19: #{tpu_custom_call.1} parent=1 // pred_check_branch
      %185 = sbr.rel (0) target = $region21
    $region20: #{tpu_custom_call.1} parent=1 // pred_region
      %s187 = ssub.s32 128, 128
      %188 = vsyncadd [#allocation4], %s187
      %s190 = sshll.u32 [#allocation7], 4
      %s191 = int_to_ptr.vmem [resolvable:$true] %s190
      %193 = dma.vmem_to_hbm [thread:$0]  %s191, 128, %s2, [#allocation4]
    $region21: #{tpu_custom_call.1} parent=1 // pred_fallthru
      _
    // Predicated region
    $region22: #{tpu_custom_call.1} parent=1 // pred_check
      _
    $region23: #{tpu_custom_call.1} parent=1 // pred_check_branch
      %195 = sbr.rel (0) target = $region25
    $region24: #{tpu_custom_call.1} parent=1 // pred_region
      %196 = dma.done [#allocation4], 128
    $region25: #{tpu_custom_call.1} parent=1 // pred_fallthru
      _
    %197 = vsyncpa [#allocation3], 1
    %198 = vsyncpa [#allocation6], 1
    %199 = vsyncpa [#allocation4], 1

</llo_original>
